<compile_context>
chip_gen: v5e
topology: v5e:2x2
jax: 0.10.0
libtpu: 0.0.40
codegen_flags: <defaults>
</compile_context>

<pallas_src>
import math

import jax
import jax.numpy as jnp
from jax.experimental import pallas as pl
from jax.experimental.pallas import tpu as pltpu


# ---------------------------------------------------------------------------
# Pallas kernel
# ---------------------------------------------------------------------------
def _make_sab_kernel(num_heads, ln, eps=1e-5):
    def _layernorm(t, g, b):
        mu = jnp.mean(t, axis=-1, keepdims=True)
        var = jnp.mean(jnp.square(t - mu), axis=-1, keepdims=True)
        return (t - mu) * jax.lax.rsqrt(var + eps) * g + b

    def kernel(*refs):
        if ln:
            (xkv_ref, wq_ref, bq_ref, wk_ref, bk_ref, wv_ref, bv_ref,
             wo_ref, bo_ref, g0_ref, be0_ref, g1_ref, be1_ref,
             o_ref, kh_ref, vh_ref, oacc_ref) = refs
        else:
            (xkv_ref, wq_ref, bq_ref, wk_ref, bk_ref, wv_ref, bv_ref,
             wo_ref, bo_ref,
             o_ref, kh_ref, vh_ref, oacc_ref) = refs

        dim_v = wq_ref.shape[1]
        ds_ = dim_v // num_heads
        tq = o_ref.shape[1]
        i = pl.program_id(1)

        # ---- K / V projections: once per batch element, cached in VMEM ----
        # NOTE: the 1/sqrt(dim_V) score scale is already folded into wk/bk.
        @pl.when(i == 0)
        def _():
            xkv = xkv_ref[0]                                   # (N, dim_in) bf16
            k = jnp.dot(xkv, wk_ref[...],
                        preferred_element_type=jnp.float32) + bk_ref[...]
            v = jnp.dot(xkv, wv_ref[...],
                        preferred_element_type=jnp.float32) + bv_ref[...]
            k = k.astype(jnp.bfloat16)
            v = v.astype(jnp.bfloat16)
            for h in range(num_heads):
                sl = slice(h * ds_, (h + 1) * ds_)
                kh_ref[h] = k[:, sl]                           # (N, ds) per head
                vh_ref[h] = v[:, sl]

        # ---- Q projection for this query-row tile (sliced from xkv) -------
        start = pl.multiple_of(i * tq, tq)
        xq = xkv_ref[0, pl.ds(start, tq), :]                   # (tq, dim_in) bf16
        q = jnp.dot(xq, wq_ref[...],
                    preferred_element_type=jnp.float32) + bq_ref[...]   # f32
        q_bf = q.astype(jnp.bfloat16)

        # ---- per-head attention, post-matmul softmax normalization --------
        for h in range(num_heads):
            sl = slice(h * ds_, (h + 1) * ds_)
            qh = q_bf[:, sl]                                   # (tq, ds) bf16
            # scores (tq, N): contract over head dim, bf16 operands, f32 acc.
            s = jax.lax.dot_general(
                qh, kh_ref[h], (((1,), (1,)), ((), ())),
                preferred_element_type=jnp.float32)
            m = jnp.max(s, axis=-1, keepdims=True)
            p = jnp.exp(s - m)                                 # f32 (v5e-safe)
            l = jnp.sum(p, axis=-1, keepdims=True)
            av = jnp.dot(p.astype(jnp.bfloat16), vh_ref[h],
                         preferred_element_type=jnp.float32)   # (tq, ds) f32
            # residual uses the UNscaled f32 Q projection.
            oacc_ref[:, sl] = q[:, sl] + av * pl.reciprocal(l, approx=True)

        o = oacc_ref[...]                                      # (tq, dim_V) f32
        if ln:
            o = _layernorm(o, g0_ref[...], be0_ref[...])
        f = jnp.dot(o.astype(jnp.bfloat16), wo_ref[...],
                    preferred_element_type=jnp.float32) + bo_ref[...]
        o = o + jnp.maximum(f, 0.0)                            # O + relu(fc_o(O))
        if ln:
            o = _layernorm(o, g1_ref[...], be1_ref[...])
        o_ref[0] = o.astype(o_ref.dtype)

    return kernel


# ---------------------------------------------------------------------------
# pallas_call wrapper
# ---------------------------------------------------------------------------
def _pick_tq(N, tq):
    if tq is not None:
        assert N % tq == 0, "query-row tile must divide the set size"
        return tq
    if N <= 256:
        return N
    for cand in range(256, 0, -1):
        if N % cand == 0 and (cand % 8 == 0 or cand == N):
            return cand
    return N


def _vmem_limit_bytes(N, dim_in, dim_v, tq):
    bf, f32 = 2, 4
    est = 0
    est += 2 * N * dim_in * bf              # xkv block (double-buffered)
    est += 2 * 3 * dim_in * dim_v * bf      # wq/wk/wv (double-buffered)
    est += 2 * dim_v * dim_v * bf           # wo
    est += 2 * 8 * dim_v * f32              # biases / LN params
    est += 2 * tq * dim_v * f32             # output tile (double-buffered)
    est += 2 * N * dim_v * bf               # per-head K/V caches
    est += tq * dim_v * f32                 # attention-output scratch
    est += 3 * tq * dim_v * f32             # q / fc_o live intermediates
    est += 3 * tq * N * f32                 # scores / exp live per head
    est += 2 * N * dim_v * f32              # K/V projection temporaries (i==0)
    est = int(est * 1.5) + (4 << 20)        # headroom for compiler temps
    return max(32 << 20, min(est, 64 << 20))   # 64 MiB = v7x physical VMEM


def sab_forward(params, x, *, num_heads, ln=False, tq=None, out_dtype=None):
    """x: (B, N, dim_in); params in PyTorch (out, in) layout."""
    B, N, dim_in = x.shape
    dim_v = params["wq"].shape[0]
    assert dim_v % num_heads == 0
    ds_ = dim_v // num_heads

    tq = _pick_tq(N, tq)
    n_qt = N // tq
    out_dtype = out_dtype or x.dtype
    scale = 1.0 / math.sqrt(dim_v)          # NOTE: sqrt(dim_V), not sqrt(ds)

    # bf16 MXU operands; scale folded into fc_k (K only feeds the score dot).
    x_bf = x.astype(jnp.bfloat16)
    wq = params["wq"].T.astype(jnp.bfloat16)              # (dim_in, dim_V)
    wk = (params["wk"].T * scale).astype(jnp.bfloat16)
    wv = params["wv"].T.astype(jnp.bfloat16)
    wo = params["wo"].T.astype(jnp.bfloat16)
    bq = params["bq"].reshape(1, dim_v).astype(jnp.float32)
    bk = (params["bk"] * scale).reshape(1, dim_v).astype(jnp.float32)
    bv = params["bv"].reshape(1, dim_v).astype(jnp.float32)
    bo = params["bo"].reshape(1, dim_v).astype(jnp.float32)

    def rep(shape):                          # grid-invariant (resident) block
        return pl.BlockSpec(shape, lambda b, i: (0,) * len(shape))

    in_specs = [
        pl.BlockSpec((1, N, dim_in), lambda b, i: (b, 0, 0)),   # full set X
        rep((dim_in, dim_v)), rep((1, dim_v)),                  # fc_q
        rep((dim_in, dim_v)), rep((1, dim_v)),                  # fc_k (pre-scaled)
        rep((dim_in, dim_v)), rep((1, dim_v)),                  # fc_v
        rep((dim_v, dim_v)), rep((1, dim_v)),                   # fc_o
    ]
    args = [x_bf, wq, bq, wk, bk, wv, bv, wo, bo]
    if ln:
        for name in ("g0", "b0", "g1", "b1"):
            in_specs.append(rep((1, dim_v)))
            args.append(params[name].reshape(1, dim_v).astype(jnp.float32))

    scratch_shapes = [
        pltpu.VMEM((num_heads, N, ds_), jnp.bfloat16),   # per-head K cache
        pltpu.VMEM((num_heads, N, ds_), jnp.bfloat16),   # per-head V cache
        pltpu.VMEM((tq, dim_v), jnp.float32),            # attention-out tile
    ]

    return pl.pallas_call(
        _make_sab_kernel(num_heads, ln),
        out_shape=jax.ShapeDtypeStruct((B, N, dim_v), out_dtype),
        grid=(B, n_qt),
        in_specs=in_specs,
        out_specs=pl.BlockSpec((1, tq, dim_v), lambda b, i: (b, i, 0)),
        scratch_shapes=scratch_shapes,
        compiler_params=pltpu.CompilerParams(
            # i axis MUST be "arbitrary": K/V cache persists across i steps.
            dimension_semantics=("parallel", "arbitrary"),
            vmem_limit_bytes=_vmem_limit_bytes(N, dim_in, dim_v, tq)),
    )(*args)


# ---------------------------------------------------------------------------
# Parameter init + pure-JAX reference (for correctness check)
# ---------------------------------------------------------------------------
def init_sab_params(key, dim_in, dim_out, ln=False):
    ks = jax.random.split(key, 8)

    def linear(kw, kb, fan_in, fan_out):
        bound = 1.0 / math.sqrt(fan_in)
        w = jax.random.uniform(kw, (fan_out, fan_in), jnp.float32, -bound, bound)
        b = jax.random.uniform(kb, (fan_out,), jnp.float32, -bound, bound)
        return w, b

    wq, bq = linear(ks[0], ks[1], dim_in, dim_out)
    wk, bk = linear(ks[2], ks[3], dim_in, dim_out)
    wv, bv = linear(ks[4], ks[5], dim_in, dim_out)
    wo, bo = linear(ks[6], ks[7], dim_out, dim_out)
    p = dict(wq=wq, bq=bq, wk=wk, bk=bk, wv=wv, bv=bv, wo=wo, bo=bo)
    if ln:
        p.update(g0=jnp.ones((dim_out,), jnp.float32),
                 b0=jnp.zeros((dim_out,), jnp.float32),
                 g1=jnp.ones((dim_out,), jnp.float32),
                 b1=jnp.zeros((dim_out,), jnp.float32))
    return p


def sab_reference(params, x, *, num_heads, ln=False, eps=1e-5):
    dim_v = params["wq"].shape[0]
    q = x @ params["wq"].T + params["bq"]
    k = x @ params["wk"].T + params["bk"]
    v = x @ params["wv"].T + params["bv"]
    q_ = jnp.concatenate(jnp.split(q, num_heads, axis=2), axis=0)
    k_ = jnp.concatenate(jnp.split(k, num_heads, axis=2), axis=0)
    v_ = jnp.concatenate(jnp.split(v, num_heads, axis=2), axis=0)
    a = jax.nn.softmax(
        jnp.einsum("bnd,bmd->bnm", q_, k_) / math.sqrt(dim_v), axis=-1)
    o = q_ + jnp.einsum("bnm,bmd->bnd", a, v_)
    o = jnp.concatenate(jnp.split(o, num_heads, axis=0), axis=2)

    def layernorm(t, g, b):
        mu = jnp.mean(t, axis=-1, keepdims=True)
        var = jnp.mean(jnp.square(t - mu), axis=-1, keepdims=True)
        return (t - mu) * jax.lax.rsqrt(var + eps) * g + b

    if ln:
        o = layernorm(o, params["g0"], params["b0"])
    o = o + jax.nn.relu(o @ params["wo"].T + params["bo"])
    if ln:
        o = layernorm(o, params["g1"], params["b1"])
    return o


if __name__ == "__main__":
    key = jax.random.PRNGKey(0)
    k_param, k_x = jax.random.split(key)

    B, N, dim_in, dim_out, num_heads = 2, 8, 4, 32, 4
    params = init_sab_params(k_param, dim_in, dim_out, ln=True)
    x = jax.random.normal(k_x, (B, N, dim_in), jnp.float32)

    for ln in (False, True):            # SAB default is ln=False; both supported
        out = jax.block_until_ready(
            sab_forward(params, x, num_heads=num_heads, ln=ln))
        ref = jax.block_until_ready(
            sab_reference(params, x, num_heads=num_heads, ln=ln))
        assert out.shape == (B, N, dim_out), out.shape
        assert bool(jnp.all(jnp.isfinite(out)))
        # Tolerance widened slightly vs the f32-only version: MXU operands are
        # now bf16 (f32 accumulation), reference is pure f32.
        assert bool(jnp.allclose(out, ref, atol=5e-2, rtol=5e-2)), \
            float(jnp.max(jnp.abs(out - ref)))

    print("KERNEL_OK")
</pallas_src>

<mosaic_0001>
module attributes {stable_mosaic.version = 11 : i64} {
  func.func @kernel(%arg0: i32, %arg1: i32, %arg2: memref<1x8x4xbf16, #tpu.memory_space<vmem>>, %arg3: memref<4x32xbf16, #tpu.memory_space<vmem>>, %arg4: memref<1x32xf32, #tpu.memory_space<vmem>>, %arg5: memref<4x32xbf16, #tpu.memory_space<vmem>>, %arg6: memref<1x32xf32, #tpu.memory_space<vmem>>, %arg7: memref<4x32xbf16, #tpu.memory_space<vmem>>, %arg8: memref<1x32xf32, #tpu.memory_space<vmem>>, %arg9: memref<32x32xbf16, #tpu.memory_space<vmem>>, %arg10: memref<1x32xf32, #tpu.memory_space<vmem>>, %arg11: memref<1x8x32xf32, #tpu.memory_space<vmem>>, %arg12: memref<4x8x8xbf16, #tpu.memory_space<vmem>>, %arg13: memref<4x8x8xbf16, #tpu.memory_space<vmem>>, %arg14: memref<8x32xf32, #tpu.memory_space<vmem>>) attributes {dimension_semantics = [#tpu.dimension_semantics<parallel>, #tpu.dimension_semantics<arbitrary>], iteration_bounds = array<i64: 2, 1>, scalar_prefetch = 0 : i64, scratch_operands = 3 : i64, tpu.core_type = #tpu.core_type<tc>, window_params = [{transform_indices = @transform_0, window_bounds = array<i64: 1, 8, 4>}, {pipeline_mode = #tpu.pipeline_mode<synchronous>, transform_indices = @transform_1, window_bounds = array<i64: 4, 32>}, {pipeline_mode = #tpu.pipeline_mode<synchronous>, transform_indices = @transform_2, window_bounds = array<i64: 1, 32>}, {pipeline_mode = #tpu.pipeline_mode<synchronous>, transform_indices = @transform_3, window_bounds = array<i64: 4, 32>}, {pipeline_mode = #tpu.pipeline_mode<synchronous>, transform_indices = @transform_4, window_bounds = array<i64: 1, 32>}, {pipeline_mode = #tpu.pipeline_mode<synchronous>, transform_indices = @transform_5, window_bounds = array<i64: 4, 32>}, {pipeline_mode = #tpu.pipeline_mode<synchronous>, transform_indices = @transform_6, window_bounds = array<i64: 1, 32>}, {pipeline_mode = #tpu.pipeline_mode<synchronous>, transform_indices = @transform_7, window_bounds = array<i64: 32, 32>}, {pipeline_mode = #tpu.pipeline_mode<synchronous>, transform_indices = @transform_8, window_bounds = array<i64: 1, 32>}, {transform_indices = @transform_9, window_bounds = array<i64: 1, 8, 32>}]} {
    %c0_i32 = arith.constant 0 : i32
    %0 = arith.cmpi eq, %arg1, %c0_i32 : i32
    %1 = arith.extui %0 : i1 to i32
    %c0_i32_0 = arith.constant 0 : i32
    %2 = arith.cmpi ne, %1, %c0_i32_0 : i32
    scf.if %2 {
      %c0_59 = arith.constant 0 : index
      %c0_60 = arith.constant 0 : index
      %c0_61 = arith.constant 0 : index
      %111 = vector.load %arg2[%c0_59, %c0_60, %c0_61] : memref<1x8x4xbf16, #tpu.memory_space<vmem>>, vector<1x8x4xbf16>
      %112 = vector.shape_cast %111 : vector<1x8x4xbf16> to vector<8x4xbf16>
      %c0_62 = arith.constant 0 : index
      %c0_63 = arith.constant 0 : index
      %113 = vector.load %arg5[%c0_62, %c0_63] : memref<4x32xbf16, #tpu.memory_space<vmem>>, vector<4x32xbf16>
      %cst_64 = arith.constant dense<0.000000e+00> : vector<8x32xf32>
      %114 = tpu.matmul %112, %113, %cst_64 {dimension_numbers = #tpu.dot_dimension_numbers<[1], [0], [0], [1], [0, 0, 1, 1], [], []>} : vector<8x4xbf16>, vector<4x32xbf16>, vector<8x32xf32> -> vector<8x32xf32>
      %c0_65 = arith.constant 0 : index
      %c0_66 = arith.constant 0 : index
      %115 = vector.load %arg6[%c0_65, %c0_66] : memref<1x32xf32, #tpu.memory_space<vmem>>, vector<1x32xf32>
      %116 = vector.broadcast %115 : vector<1x32xf32> to vector<8x32xf32>
      %117 = arith.addf %114, %116 : vector<8x32xf32>
      %c0_67 = arith.constant 0 : index
      %c0_68 = arith.constant 0 : index
      %118 = vector.load %arg7[%c0_67, %c0_68] : memref<4x32xbf16, #tpu.memory_space<vmem>>, vector<4x32xbf16>
      %cst_69 = arith.constant dense<0.000000e+00> : vector<8x32xf32>
      %119 = tpu.matmul %112, %118, %cst_69 {dimension_numbers = #tpu.dot_dimension_numbers<[1], [0], [0], [1], [0, 0, 1, 1], [], []>} : vector<8x4xbf16>, vector<4x32xbf16>, vector<8x32xf32> -> vector<8x32xf32>
      %c0_70 = arith.constant 0 : index
      %c0_71 = arith.constant 0 : index
      %120 = vector.load %arg8[%c0_70, %c0_71] : memref<1x32xf32, #tpu.memory_space<vmem>>, vector<1x32xf32>
      %121 = vector.broadcast %120 : vector<1x32xf32> to vector<8x32xf32>
      %122 = arith.addf %119, %121 : vector<8x32xf32>
      %123 = arith.truncf %117 : vector<8x32xf32> to vector<8x32xbf16>
      %124 = arith.truncf %122 : vector<8x32xf32> to vector<8x32xbf16>
      %125 = vector.extract_strided_slice %123 {offsets = [0, 0], sizes = [8, 8], strides = [1, 1]} : vector<8x32xbf16> to vector<8x8xbf16>
      %c0_72 = arith.constant 0 : index
      %c0_73 = arith.constant 0 : index
      %c0_74 = arith.constant 0 : index
      %126 = vector.load %arg12[%c0_72, %c0_73, %c0_74] : memref<4x8x8xbf16, #tpu.memory_space<vmem>>, vector<1x8x8xbf16>
      %127 = vector.shape_cast %126 : vector<1x8x8xbf16> to vector<8x8xbf16>
      %128 = vector.shape_cast %125 : vector<8x8xbf16> to vector<1x8x8xbf16>
      tpu.vector_store %arg12[%c0_72, %c0_73, %c0_74], %128 {strides = array<i32>} : memref<4x8x8xbf16, #tpu.memory_space<vmem>>, vector<1x8x8xbf16>,
      %129 = vector.extract_strided_slice %124 {offsets = [0, 0], sizes = [8, 8], strides = [1, 1]} : vector<8x32xbf16> to vector<8x8xbf16>
      %c0_75 = arith.constant 0 : index
      %c0_76 = arith.constant 0 : index
      %c0_77 = arith.constant 0 : index
      %130 = vector.load %arg13[%c0_75, %c0_76, %c0_77] : memref<4x8x8xbf16, #tpu.memory_space<vmem>>, vector<1x8x8xbf16>
      %131 = vector.shape_cast %130 : vector<1x8x8xbf16> to vector<8x8xbf16>
      %132 = vector.shape_cast %129 : vector<8x8xbf16> to vector<1x8x8xbf16>
      tpu.vector_store %arg13[%c0_75, %c0_76, %c0_77], %132 {strides = array<i32>} : memref<4x8x8xbf16, #tpu.memory_space<vmem>>, vector<1x8x8xbf16>,
      %133 = vector.extract_strided_slice %123 {offsets = [0, 8], sizes = [8, 8], strides = [1, 1]} : vector<8x32xbf16> to vector<8x8xbf16>
      %c1_78 = arith.constant 1 : index
      %c0_79 = arith.constant 0 : index
      %c0_80 = arith.constant 0 : index
      %134 = vector.load %arg12[%c1_78, %c0_79, %c0_80] : memref<4x8x8xbf16, #tpu.memory_space<vmem>>, vector<1x8x8xbf16>
      %135 = vector.shape_cast %134 : vector<1x8x8xbf16> to vector<8x8xbf16>
      %136 = vector.shape_cast %133 : vector<8x8xbf16> to vector<1x8x8xbf16>
      tpu.vector_store %arg12[%c1_78, %c0_79, %c0_80], %136 {strides = array<i32>} : memref<4x8x8xbf16, #tpu.memory_space<vmem>>, vector<1x8x8xbf16>,
      %137 = vector.extract_strided_slice %124 {offsets = [0, 8], sizes = [8, 8], strides = [1, 1]} : vector<8x32xbf16> to vector<8x8xbf16>
      %c1_81 = arith.constant 1 : index
      %c0_82 = arith.constant 0 : index
      %c0_83 = arith.constant 0 : index
      %138 = vector.load %arg13[%c1_81, %c0_82, %c0_83] : memref<4x8x8xbf16, #tpu.memory_space<vmem>>, vector<1x8x8xbf16>
      %139 = vector.shape_cast %138 : vector<1x8x8xbf16> to vector<8x8xbf16>
      %140 = vector.shape_cast %137 : vector<8x8xbf16> to vector<1x8x8xbf16>
      tpu.vector_store %arg13[%c1_81, %c0_82, %c0_83], %140 {strides = array<i32>} : memref<4x8x8xbf16, #tpu.memory_space<vmem>>, vector<1x8x8xbf16>,
      %141 = vector.extract_strided_slice %123 {offsets = [0, 16], sizes = [8, 8], strides = [1, 1]} : vector<8x32xbf16> to vector<8x8xbf16>
      %c2_84 = arith.constant 2 : index
      %c0_85 = arith.constant 0 : index
      %c0_86 = arith.constant 0 : index
      %142 = vector.load %arg12[%c2_84, %c0_85, %c0_86] : memref<4x8x8xbf16, #tpu.memory_space<vmem>>, vector<1x8x8xbf16>
      %143 = vector.shape_cast %142 : vector<1x8x8xbf16> to vector<8x8xbf16>
      %144 = vector.shape_cast %141 : vector<8x8xbf16> to vector<1x8x8xbf16>
      tpu.vector_store %arg12[%c2_84, %c0_85, %c0_86], %144 {strides = array<i32>} : memref<4x8x8xbf16, #tpu.memory_space<vmem>>, vector<1x8x8xbf16>,
      %145 = vector.extract_strided_slice %124 {offsets = [0, 16], sizes = [8, 8], strides = [1, 1]} : vector<8x32xbf16> to vector<8x8xbf16>
      %c2_87 = arith.constant 2 : index
      %c0_88 = arith.constant 0 : index
      %c0_89 = arith.constant 0 : index
      %146 = vector.load %arg13[%c2_87, %c0_88, %c0_89] : memref<4x8x8xbf16, #tpu.memory_space<vmem>>, vector<1x8x8xbf16>
      %147 = vector.shape_cast %146 : vector<1x8x8xbf16> to vector<8x8xbf16>
      %148 = vector.shape_cast %145 : vector<8x8xbf16> to vector<1x8x8xbf16>
      tpu.vector_store %arg13[%c2_87, %c0_88, %c0_89], %148 {strides = array<i32>} : memref<4x8x8xbf16, #tpu.memory_space<vmem>>, vector<1x8x8xbf16>,
      %149 = vector.extract_strided_slice %123 {offsets = [0, 24], sizes = [8, 8], strides = [1, 1]} : vector<8x32xbf16> to vector<8x8xbf16>
      %c3_90 = arith.constant 3 : index
      %c0_91 = arith.constant 0 : index
      %c0_92 = arith.constant 0 : index
      %150 = vector.load %arg12[%c3_90, %c0_91, %c0_92] : memref<4x8x8xbf16, #tpu.memory_space<vmem>>, vector<1x8x8xbf16>
      %151 = vector.shape_cast %150 : vector<1x8x8xbf16> to vector<8x8xbf16>
      %152 = vector.shape_cast %149 : vector<8x8xbf16> to vector<1x8x8xbf16>
      tpu.vector_store %arg12[%c3_90, %c0_91, %c0_92], %152 {strides = array<i32>} : memref<4x8x8xbf16, #tpu.memory_space<vmem>>, vector<1x8x8xbf16>,
      %153 = vector.extract_strided_slice %124 {offsets = [0, 24], sizes = [8, 8], strides = [1, 1]} : vector<8x32xbf16> to vector<8x8xbf16>
      %c3_93 = arith.constant 3 : index
      %c0_94 = arith.constant 0 : index
      %c0_95 = arith.constant 0 : index
      %154 = vector.load %arg13[%c3_93, %c0_94, %c0_95] : memref<4x8x8xbf16, #tpu.memory_space<vmem>>, vector<1x8x8xbf16>
      %155 = vector.shape_cast %154 : vector<1x8x8xbf16> to vector<8x8xbf16>
      %156 = vector.shape_cast %153 : vector<8x8xbf16> to vector<1x8x8xbf16>
      tpu.vector_store %arg13[%c3_93, %c0_94, %c0_95], %156 {strides = array<i32>} : memref<4x8x8xbf16, #tpu.memory_space<vmem>>, vector<1x8x8xbf16>,
    } else {
    }
    %c8_i32 = arith.constant 8 : i32
    %3 = arith.muli %arg1, %c8_i32 : i32
    %4 = tpu.assume_multiple %3, 8 : i32
    %c0 = arith.constant 0 : index
    %5 = arith.index_cast %4 : i32 to index
    %c0_1 = arith.constant 0 : index
    %6 = vector.load %arg2[%c0, %5, %c0_1] : memref<1x8x4xbf16, #tpu.memory_space<vmem>>, vector<1x8x4xbf16>
    %7 = vector.shape_cast %6 : vector<1x8x4xbf16> to vector<8x4xbf16>
    %c0_2 = arith.constant 0 : index
    %c0_3 = arith.constant 0 : index
    %8 = vector.load %arg3[%c0_2, %c0_3] : memref<4x32xbf16, #tpu.memory_space<vmem>>, vector<4x32xbf16>
    %cst = arith.constant dense<0.000000e+00> : vector<8x32xf32>
    %9 = tpu.matmul %7, %8, %cst {dimension_numbers = #tpu.dot_dimension_numbers<[1], [0], [0], [1], [0, 0, 1, 1], [], []>} : vector<8x4xbf16>, vector<4x32xbf16>, vector<8x32xf32> -> vector<8x32xf32>
    %c0_4 = arith.constant 0 : index
    %c0_5 = arith.constant 0 : index
    %10 = vector.load %arg4[%c0_4, %c0_5] : memref<1x32xf32, #tpu.memory_space<vmem>>, vector<1x32xf32>
    %11 = vector.broadcast %10 : vector<1x32xf32> to vector<8x32xf32>
    %12 = arith.addf %9, %11 : vector<8x32xf32>
    %13 = arith.truncf %12 : vector<8x32xf32> to vector<8x32xbf16>
    %14 = vector.extract_strided_slice %13 {offsets = [0, 0], sizes = [8, 8], strides = [1, 1]} : vector<8x32xbf16> to vector<8x8xbf16>
    %c0_6 = arith.constant 0 : index
    %c0_7 = arith.constant 0 : index
    %c0_8 = arith.constant 0 : index
    %15 = vector.load %arg12[%c0_6, %c0_7, %c0_8] : memref<4x8x8xbf16, #tpu.memory_space<vmem>>, vector<1x8x8xbf16>
    %16 = vector.shape_cast %15 : vector<1x8x8xbf16> to vector<8x8xbf16>
    %cst_9 = arith.constant dense<0.000000e+00> : vector<8x8xf32>
    %17 = tpu.matmul %14, %16, %cst_9 {dimension_numbers = #tpu.dot_dimension_numbers<[1], [1], [0], [0], [0, 0, 1, 0], [], []>} : vector<8x8xbf16>, vector<8x8xbf16>, vector<8x8xf32> -> vector<8x8xf32>
    %cst_10 = arith.constant dense<0xFF800000> : vector<8xf32>
    %18 = vector.multi_reduction <maximumf>, %17, %cst_10 [1] : vector<8x8xf32> to vector<8xf32>
    %19 = vector.shape_cast %18 : vector<8xf32> to vector<8x1xf32>
    %20 = vector.broadcast %19 : vector<8x1xf32> to vector<8x8xf32>
    %21 = arith.subf %17, %20 : vector<8x8xf32>
    %22 = math.exp %21 : vector<8x8xf32>
    %cst_11 = arith.constant dense<0.000000e+00> : vector<8xf32>
    %23 = vector.multi_reduction <add>, %22, %cst_11 [1] : vector<8x8xf32> to vector<8xf32>
    %24 = vector.shape_cast %23 : vector<8xf32> to vector<8x1xf32>
    %25 = arith.truncf %22 : vector<8x8xf32> to vector<8x8xbf16>
    %c0_12 = arith.constant 0 : index
    %c0_13 = arith.constant 0 : index
    %c0_14 = arith.constant 0 : index
    %26 = vector.load %arg13[%c0_12, %c0_13, %c0_14] : memref<4x8x8xbf16, #tpu.memory_space<vmem>>, vector<1x8x8xbf16>
    %27 = vector.shape_cast %26 : vector<1x8x8xbf16> to vector<8x8xbf16>
    %cst_15 = arith.constant dense<0.000000e+00> : vector<8x8xf32>
    %28 = tpu.matmul %25, %27, %cst_15 {dimension_numbers = #tpu.dot_dimension_numbers<[1], [0], [0], [1], [0, 0, 1, 1], [], []>} : vector<8x8xbf16>, vector<8x8xbf16>, vector<8x8xf32> -> vector<8x8xf32>
    %29 = vector.extract_strided_slice %12 {offsets = [0, 0], sizes = [8, 8], strides = [1, 1]} : vector<8x32xf32> to vector<8x8xf32>
    %30 = tpu.reciprocal %24 {approx = true} : vector<8x1xf32> -> vector<8x1xf32>
    %31 = vector.broadcast %30 : vector<8x1xf32> to vector<8x8xf32>
    %32 = arith.mulf %28, %31 : vector<8x8xf32>
    %33 = arith.addf %29, %32 : vector<8x8xf32>
    %c0_16 = arith.constant 0 : index
    %c0_17 = arith.constant 0 : index
    %34 = vector.load %arg14[%c0_16, %c0_17] : memref<8x32xf32, #tpu.memory_space<vmem>>, vector<8x8xf32>
    tpu.vector_store %arg14[%c0_16, %c0_17], %33 {strides = array<i32>} : memref<8x32xf32, #tpu.memory_space<vmem>>, vector<8x8xf32>,
    %35 = vector.extract_strided_slice %13 {offsets = [0, 8], sizes = [8, 8], strides = [1, 1]} : vector<8x32xbf16> to vector<8x8xbf16>
    %c1 = arith.constant 1 : index
    %c0_18 = arith.constant 0 : index
    %c0_19 = arith.constant 0 : index
    %36 = vector.load %arg12[%c1, %c0_18, %c0_19] : memref<4x8x8xbf16, #tpu.memory_space<vmem>>, vector<1x8x8xbf16>
    %37 = vector.shape_cast %36 : vector<1x8x8xbf16> to vector<8x8xbf16>
    %cst_20 = arith.constant dense<0.000000e+00> : vector<8x8xf32>
    %38 = tpu.matmul %35, %37, %cst_20 {dimension_numbers = #tpu.dot_dimension_numbers<[1], [1], [0], [0], [0, 0, 1, 0], [], []>} : vector<8x8xbf16>, vector<8x8xbf16>, vector<8x8xf32> -> vector<8x8xf32>
    %cst_21 = arith.constant dense<0xFF800000> : vector<8xf32>
    %39 = vector.multi_reduction <maximumf>, %38, %cst_21 [1] : vector<8x8xf32> to vector<8xf32>
    %40 = vector.shape_cast %39 : vector<8xf32> to vector<8x1xf32>
    %41 = vector.broadcast %40 : vector<8x1xf32> to vector<8x8xf32>
    %42 = arith.subf %38, %41 : vector<8x8xf32>
    %43 = math.exp %42 : vector<8x8xf32>
    %cst_22 = arith.constant dense<0.000000e+00> : vector<8xf32>
    %44 = vector.multi_reduction <add>, %43, %cst_22 [1] : vector<8x8xf32> to vector<8xf32>
    %45 = vector.shape_cast %44 : vector<8xf32> to vector<8x1xf32>
    %46 = arith.truncf %43 : vector<8x8xf32> to vector<8x8xbf16>
    %c1_23 = arith.constant 1 : index
    %c0_24 = arith.constant 0 : index
    %c0_25 = arith.constant 0 : index
    %47 = vector.load %arg13[%c1_23, %c0_24, %c0_25] : memref<4x8x8xbf16, #tpu.memory_space<vmem>>, vector<1x8x8xbf16>
    %48 = vector.shape_cast %47 : vector<1x8x8xbf16> to vector<8x8xbf16>
    %cst_26 = arith.constant dense<0.000000e+00> : vector<8x8xf32>
    %49 = tpu.matmul %46, %48, %cst_26 {dimension_numbers = #tpu.dot_dimension_numbers<[1], [0], [0], [1], [0, 0, 1, 1], [], []>} : vector<8x8xbf16>, vector<8x8xbf16>, vector<8x8xf32> -> vector<8x8xf32>
    %50 = vector.extract_strided_slice %12 {offsets = [0, 8], sizes = [8, 8], strides = [1, 1]} : vector<8x32xf32> to vector<8x8xf32>
    %51 = tpu.reciprocal %45 {approx = true} : vector<8x1xf32> -> vector<8x1xf32>
    %52 = vector.broadcast %51 : vector<8x1xf32> to vector<8x8xf32>
    %53 = arith.mulf %49, %52 : vector<8x8xf32>
    %54 = arith.addf %50, %53 : vector<8x8xf32>
    %c0_27 = arith.constant 0 : index
    %c8 = arith.constant 8 : index
    %55 = vector.load %arg14[%c0_27, %c8] : memref<8x32xf32, #tpu.memory_space<vmem>>, vector<8x8xf32>
    tpu.vector_store %arg14[%c0_27, %c8], %54 {strides = array<i32>} : memref<8x32xf32, #tpu.memory_space<vmem>>, vector<8x8xf32>,
    %56 = vector.extract_strided_slice %13 {offsets = [0, 16], sizes = [8, 8], strides = [1, 1]} : vector<8x32xbf16> to vector<8x8xbf16>
    %c2 = arith.constant 2 : index
    %c0_28 = arith.constant 0 : index
    %c0_29 = arith.constant 0 : index
    %57 = vector.load %arg12[%c2, %c0_28, %c0_29] : memref<4x8x8xbf16, #tpu.memory_space<vmem>>, vector<1x8x8xbf16>
    %58 = vector.shape_cast %57 : vector<1x8x8xbf16> to vector<8x8xbf16>
    %cst_30 = arith.constant dense<0.000000e+00> : vector<8x8xf32>
    %59 = tpu.matmul %56, %58, %cst_30 {dimension_numbers = #tpu.dot_dimension_numbers<[1], [1], [0], [0], [0, 0, 1, 0], [], []>} : vector<8x8xbf16>, vector<8x8xbf16>, vector<8x8xf32> -> vector<8x8xf32>
    %cst_31 = arith.constant dense<0xFF800000> : vector<8xf32>
    %60 = vector.multi_reduction <maximumf>, %59, %cst_31 [1] : vector<8x8xf32> to vector<8xf32>
    %61 = vector.shape_cast %60 : vector<8xf32> to vector<8x1xf32>
    %62 = vector.broadcast %61 : vector<8x1xf32> to vector<8x8xf32>
    %63 = arith.subf %59, %62 : vector<8x8xf32>
    %64 = math.exp %63 : vector<8x8xf32>
    %cst_32 = arith.constant dense<0.000000e+00> : vector<8xf32>
    %65 = vector.multi_reduction <add>, %64, %cst_32 [1] : vector<8x8xf32> to vector<8xf32>
    %66 = vector.shape_cast %65 : vector<8xf32> to vector<8x1xf32>
    %67 = arith.truncf %64 : vector<8x8xf32> to vector<8x8xbf16>
    %c2_33 = arith.constant 2 : index
    %c0_34 = arith.constant 0 : index
    %c0_35 = arith.constant 0 : index
    %68 = vector.load %arg13[%c2_33, %c0_34, %c0_35] : memref<4x8x8xbf16, #tpu.memory_space<vmem>>, vector<1x8x8xbf16>
    %69 = vector.shape_cast %68 : vector<1x8x8xbf16> to vector<8x8xbf16>
    %cst_36 = arith.constant dense<0.000000e+00> : vector<8x8xf32>
    %70 = tpu.matmul %67, %69, %cst_36 {dimension_numbers = #tpu.dot_dimension_numbers<[1], [0], [0], [1], [0, 0, 1, 1], [], []>} : vector<8x8xbf16>, vector<8x8xbf16>, vector<8x8xf32> -> vector<8x8xf32>
    %71 = vector.extract_strided_slice %12 {offsets = [0, 16], sizes = [8, 8], strides = [1, 1]} : vector<8x32xf32> to vector<8x8xf32>
    %72 = tpu.reciprocal %66 {approx = true} : vector<8x1xf32> -> vector<8x1xf32>
    %73 = vector.broadcast %72 : vector<8x1xf32> to vector<8x8xf32>
    %74 = arith.mulf %70, %73 : vector<8x8xf32>
    %75 = arith.addf %71, %74 : vector<8x8xf32>
    %c0_37 = arith.constant 0 : index
    %c16 = arith.constant 16 : index
    %76 = vector.load %arg14[%c0_37, %c16] : memref<8x32xf32, #tpu.memory_space<vmem>>, vector<8x8xf32>
    tpu.vector_store %arg14[%c0_37, %c16], %75 {strides = array<i32>} : memref<8x32xf32, #tpu.memory_space<vmem>>, vector<8x8xf32>,
    %77 = vector.extract_strided_slice %13 {offsets = [0, 24], sizes = [8, 8], strides = [1, 1]} : vector<8x32xbf16> to vector<8x8xbf16>
    %c3 = arith.constant 3 : index
    %c0_38 = arith.constant 0 : index
    %c0_39 = arith.constant 0 : index
    %78 = vector.load %arg12[%c3, %c0_38, %c0_39] : memref<4x8x8xbf16, #tpu.memory_space<vmem>>, vector<1x8x8xbf16>
    %79 = vector.shape_cast %78 : vector<1x8x8xbf16> to vector<8x8xbf16>
    %cst_40 = arith.constant dense<0.000000e+00> : vector<8x8xf32>
    %80 = tpu.matmul %77, %79, %cst_40 {dimension_numbers = #tpu.dot_dimension_numbers<[1], [1], [0], [0], [0, 0, 1, 0], [], []>} : vector<8x8xbf16>, vector<8x8xbf16>, vector<8x8xf32> -> vector<8x8xf32>
    %cst_41 = arith.constant dense<0xFF800000> : vector<8xf32>
    %81 = vector.multi_reduction <maximumf>, %80, %cst_41 [1] : vector<8x8xf32> to vector<8xf32>
    %82 = vector.shape_cast %81 : vector<8xf32> to vector<8x1xf32>
    %83 = vector.broadcast %82 : vector<8x1xf32> to vector<8x8xf32>
    %84 = arith.subf %80, %83 : vector<8x8xf32>
    %85 = math.exp %84 : vector<8x8xf32>
    %cst_42 = arith.constant dense<0.000000e+00> : vector<8xf32>
    %86 = vector.multi_reduction <add>, %85, %cst_42 [1] : vector<8x8xf32> to vector<8xf32>
    %87 = vector.shape_cast %86 : vector<8xf32> to vector<8x1xf32>
    %88 = arith.truncf %85 : vector<8x8xf32> to vector<8x8xbf16>
    %c3_43 = arith.constant 3 : index
    %c0_44 = arith.constant 0 : index
    %c0_45 = arith.constant 0 : index
    %89 = vector.load %arg13[%c3_43, %c0_44, %c0_45] : memref<4x8x8xbf16, #tpu.memory_space<vmem>>, vector<1x8x8xbf16>
    %90 = vector.shape_cast %89 : vector<1x8x8xbf16> to vector<8x8xbf16>
    %cst_46 = arith.constant dense<0.000000e+00> : vector<8x8xf32>
    %91 = tpu.matmul %88, %90, %cst_46 {dimension_numbers = #tpu.dot_dimension_numbers<[1], [0], [0], [1], [0, 0, 1, 1], [], []>} : vector<8x8xbf16>, vector<8x8xbf16>, vector<8x8xf32> -> vector<8x8xf32>
    %92 = vector.extract_strided_slice %12 {offsets = [0, 24], sizes = [8, 8], strides = [1, 1]} : vector<8x32xf32> to vector<8x8xf32>
    %93 = tpu.reciprocal %87 {approx = true} : vector<8x1xf32> -> vector<8x1xf32>
    %94 = vector.broadcast %93 : vector<8x1xf32> to vector<8x8xf32>
    %95 = arith.mulf %91, %94 : vector<8x8xf32>
    %96 = arith.addf %92, %95 : vector<8x8xf32>
    %c0_47 = arith.constant 0 : index
    %c24 = arith.constant 24 : index
    %97 = vector.load %arg14[%c0_47, %c24] : memref<8x32xf32, #tpu.memory_space<vmem>>, vector<8x8xf32>
    tpu.vector_store %arg14[%c0_47, %c24], %96 {strides = array<i32>} : memref<8x32xf32, #tpu.memory_space<vmem>>, vector<8x8xf32>,
    %c0_48 = arith.constant 0 : index
    %c0_49 = arith.constant 0 : index
    %98 = vector.load %arg14[%c0_48, %c0_49] : memref<8x32xf32, #tpu.memory_space<vmem>>, vector<8x32xf32>
    %99 = arith.truncf %98 : vector<8x32xf32> to vector<8x32xbf16>
    %c0_50 = arith.constant 0 : index
    %c0_51 = arith.constant 0 : index
    %100 = vector.load %arg9[%c0_50, %c0_51] : memref<32x32xbf16, #tpu.memory_space<vmem>>, vector<32x32xbf16>
    %cst_52 = arith.constant dense<0.000000e+00> : vector<8x32xf32>
    %101 = tpu.matmul %99, %100, %cst_52 {dimension_numbers = #tpu.dot_dimension_numbers<[1], [0], [0], [1], [0, 0, 1, 1], [], []>} : vector<8x32xbf16>, vector<32x32xbf16>, vector<8x32xf32> -> vector<8x32xf32>
    %c0_53 = arith.constant 0 : index
    %c0_54 = arith.constant 0 : index
    %102 = vector.load %arg10[%c0_53, %c0_54] : memref<1x32xf32, #tpu.memory_space<vmem>>, vector<1x32xf32>
    %103 = vector.broadcast %102 : vector<1x32xf32> to vector<8x32xf32>
    %104 = arith.addf %101, %103 : vector<8x32xf32>
    %cst_55 = arith.constant 0.000000e+00 : f32
    %105 = vector.broadcast %cst_55 : f32 to vector<8x32xf32>
    %106 = arith.maximumf %104, %105 : vector<8x32xf32>
    %107 = arith.addf %98, %106 : vector<8x32xf32>
    %c0_56 = arith.constant 0 : index
    %c0_57 = arith.constant 0 : index
    %c0_58 = arith.constant 0 : index
    %108 = vector.load %arg11[%c0_56, %c0_57, %c0_58] : memref<1x8x32xf32, #tpu.memory_space<vmem>>, vector<1x8x32xf32>
    %109 = vector.shape_cast %108 : vector<1x8x32xf32> to vector<8x32xf32>
    %110 = vector.shape_cast %107 : vector<8x32xf32> to vector<1x8x32xf32>
    tpu.vector_store %arg11[%c0_56, %c0_57, %c0_58], %110 {strides = array<i32>} : memref<1x8x32xf32, #tpu.memory_space<vmem>>, vector<1x8x32xf32>,
    return
  }
  func.func @transform_0(%arg0: i32, %arg1: i32) -> (i32, i32, i32) {
    %c0_i32 = arith.constant 0 : i32
    %c0_i32_0 = arith.constant 0 : i32
    %c0_i32_1 = arith.constant 0 : i32
    return %arg0, %c0_i32, %c0_i32_0 : i32, i32, i32
  }
  func.func @transform_1(%arg0: i32, %arg1: i32) -> (i32, i32) {
    %c0_i32 = arith.constant 0 : i32
    %c0_i32_0 = arith.constant 0 : i32
    %c0_i32_1 = arith.constant 0 : i32
    return %c0_i32, %c0_i32_0 : i32, i32
  }
  func.func @transform_2(%arg0: i32, %arg1: i32) -> (i32, i32) {
    %c0_i32 = arith.constant 0 : i32
    %c0_i32_0 = arith.constant 0 : i32
    %c0_i32_1 = arith.constant 0 : i32
    return %c0_i32, %c0_i32_0 : i32, i32
  }
  func.func @transform_3(%arg0: i32, %arg1: i32) -> (i32, i32) {
    %c0_i32 = arith.constant 0 : i32
    %c0_i32_0 = arith.constant 0 : i32
    %c0_i32_1 = arith.constant 0 : i32
    return %c0_i32, %c0_i32_0 : i32, i32
  }
  func.func @transform_4(%arg0: i32, %arg1: i32) -> (i32, i32) {
    %c0_i32 = arith.constant 0 : i32
    %c0_i32_0 = arith.constant 0 : i32
    %c0_i32_1 = arith.constant 0 : i32
    return %c0_i32, %c0_i32_0 : i32, i32
  }
  func.func @transform_5(%arg0: i32, %arg1: i32) -> (i32, i32) {
    %c0_i32 = arith.constant 0 : i32
    %c0_i32_0 = arith.constant 0 : i32
    %c0_i32_1 = arith.constant 0 : i32
    return %c0_i32, %c0_i32_0 : i32, i32
  }
  func.func @transform_6(%arg0: i32, %arg1: i32) -> (i32, i32) {
    %c0_i32 = arith.constant 0 : i32
    %c0_i32_0 = arith.constant 0 : i32
    %c0_i32_1 = arith.constant 0 : i32
    return %c0_i32, %c0_i32_0 : i32, i32
  }
  func.func @transform_7(%arg0: i32, %arg1: i32) -> (i32, i32) {
    %c0_i32 = arith.constant 0 : i32
    %c0_i32_0 = arith.constant 0 : i32
    %c0_i32_1 = arith.constant 0 : i32
    return %c0_i32, %c0_i32_0 : i32, i32
  }
  func.func @transform_8(%arg0: i32, %arg1: i32) -> (i32, i32) {
    %c0_i32 = arith.constant 0 : i32
    %c0_i32_0 = arith.constant 0 : i32
    %c0_i32_1 = arith.constant 0 : i32
    return %c0_i32, %c0_i32_0 : i32, i32
  }
  func.func @transform_9(%arg0: i32, %arg1: i32) -> (i32, i32, i32) {
    %c0_i32 = arith.constant 0 : i32
    %c0_i32_0 = arith.constant 0 : i32
    return %arg0, %arg1, %c0_i32 : i32, i32, i32
  }
}

</mosaic_0001>

<llo_original>
// kernel: tpu_custom_call.1
$region0: #{tpu_custom_call.1}
  #allocation0 [shape = 'u32[]', space=smem, size = 0x4, offset = 0x4, fixed_abs, tag = 'smem constant byte address 0x4 - core index']
  #allocation1 [shape = 'u32[72,128]{1,0:T(1,128)}', space=vmem, size = 0x9000, scoped, tag = 'internal scratch']
  #allocation2 [shape = 'bf16[4,8,8]{2,1,0:T(8,128)(2,1)}', space=vmem, size = 0x2000, scoped, tag = 'scratch operand']
  #allocation3 [shape = 'bf16[4,8,8]{2,1,0:T(8,128)(2,1)}', space=vmem, size = 0x2000, scoped, tag = 'scratch operand']
  #allocation4 [shape = 'f32[8,32]{1,0:T(8,128)}', space=vmem, size = 0x1000, scoped, tag = 'scratch operand']
  %s0 = inlined_call_operand.vmem [shape: bf16[2,8,4], index: 0, kind: input, shape index: {}]
  %s1 = inlined_call_operand.vmem [shape: bf16[4,32], index: 1, kind: input, shape index: {}]
  %s2 = inlined_call_operand.hbm [shape: f32[1,32], index: 2, kind: input, shape index: {}]
  %s3 = inlined_call_operand.hbm [shape: bf16[4,32], index: 3, kind: input, shape index: {}]
  %s4 = inlined_call_operand.hbm [shape: f32[1,32], index: 4, kind: input, shape index: {}]
  %s5 = inlined_call_operand.hbm [shape: bf16[4,32], index: 5, kind: input, shape index: {}]
  %s6 = inlined_call_operand.hbm [shape: f32[1,32], index: 6, kind: input, shape index: {}]
  %s7 = inlined_call_operand.vmem [shape: bf16[32,32], index: 7, kind: input, shape index: {}]
  %s8 = inlined_call_operand.vmem [shape: f32[1,32], index: 8, kind: input, shape index: {}]
  %s9 = inlined_call_operand.hbm [shape: f32[2,8,32], index: 9, kind: output, shape index: {}]
  %s10 = sld [smem:[#allocation0]]
  $region93: #{tpu_custom_call.1} parent=0
    _
  %s12 = ssub.s32 1, %s10
  %s13 = scalar_select 0, %s12, %s10
  $region1: #{tpu_custom_call.1} parent=0
    #allocation5 [shape = 'u8[512]{0}', space=vmem, size = 0x400, scoped, tag = 'input window, operand 2, single buffered']
    #allocation6 [shape = 's32[2]{0}', space=sflag, size = 0x8, scoped, tag = 'scoped memory for tpu_custom_call.1']
    #allocation7 [shape = 's32[2]{0}', space=sflag, size = 0x8, scoped, tag = 'scoped memory for tpu_custom_call.1']
    #allocation8 [shape = 'u8[1024]{0}', space=vmem, size = 0x400, scoped, tag = 'input window, operand 3, single buffered']
    #allocation9 [shape = 's32[1]{0}', space=sflag, size = 0x4, scoped, tag = 'scoped memory for tpu_custom_call.1']
    #allocation10 [shape = 'u8[512]{0}', space=vmem, size = 0x400, scoped, tag = 'input window, operand 4, single buffered']
    #allocation11 [shape = 'u8[1024]{0}', space=vmem, size = 0x400, scoped, tag = 'input window, operand 5, single buffered']
    #allocation12 [shape = 's32[1]{0}', space=sflag, size = 0x4, scoped, tag = 'scoped memory for tpu_custom_call.1']
    #allocation13 [shape = 'u8[512]{0}', space=vmem, size = 0x400, scoped, tag = 'input window, operand 6, single buffered']
    #allocation14 [shape = 'u8[8192]{0}', space=vmem, size = 0x2000, scoped, tag = 'output window, operand 0']
    %14 = vsyncpa [#allocation6], 0
    %15 = vsyncpa [#allocation9], 0
    %16 = vsyncpa [#allocation12], 0
    %17 = vsyncpa [#allocation7], 0
    %s18 = scalar_lea.sflag [#allocation7], 1
    %19 = vsyncpa %s18, 0
    loop: start=0, step=1, limit=4
    $region2: #{tpu_custom_call.1} parent=1 // loop_pre_header
      _
    $region3: #{tpu_custom_call.1} parent=1 // loop_header
      %s21 = sphi 0, %s25
      %p22 = scmp.ge.s32.totalorder %s21, 4
      %s28 = sphi 0, %s40
      %s29 = sphi 0, %s36
      %s30 = sphi 0, %s28
      %s31 = sphi 0, %s29
      %s32 = sphi 0, %s30
      %s33 = sphi 0, %s31
      %s43 = sphi 0, %s45
      %s46 = sphi 0, %s43
      %s47 = sphi 0, %s46
      %s63 = sphi 0, %s47
      %s67 = sphi 0, %s67
      %s69 = sphi 0, %s67
      %s70 = sphi 0, %s69
      %s84 = sphi 0, %s70
      %s88 = sphi 0, %s88
      %s90 = sphi 0, %s88
      %s91 = sphi 0, %s90
      %s105 = sphi 0, %s91
      %s109 = sphi 0, %s109
      %s111 = sphi 0, %s109
      %s112 = sphi 0, %s111
      %s126 = sphi 0, %s112
      %s130 = sphi 0, %s130
      %s132 = sphi 0, %s130
      %s133 = sphi 0, %s132
      %s147 = sphi 0, %s133
      %s151 = sphi 0, %s151
      %s153 = sphi 0, %s151
      %s154 = sphi 0, %s153
      %s168 = sphi 0, %s154
      %s172 = sphi 0, %s172
      %s174 = sphi 0, %s172
      %s175 = sphi 0, %s174
      %s189 = sphi 0, %s175
      %s193 = sphi 0, %s193
      %s195 = sphi 0, %s193
      %s196 = sphi 0, %s195
      %s210 = sphi 0, %s196
      %s214 = sphi 0, %s214
      %s216 = sphi 0, %s214
      %s217 = sphi 0, %s216
      %s231 = sphi 0, %s217
      %s239 = sphi 0, %s241
      %s242 = sphi 0, %s239
      %s243 = sphi 0, %s242
      %s259 = sphi 0, %s243
    $region4: #{tpu_custom_call.1} parent=1 // loop_header_branch
      %24 = sbr.rel (%p22) target = $region8
    $region5: #{tpu_custom_call.1} parent=1 // loop_body
      %s26 = ssub.s32 %s21, 1
      %s27 = ssub.s32 %s21, 2
      %s34 = sadd.s32 1, %s29
      %p35 = scmp.ge.s32.totalorder %s34, 1
      %s36 = scalar_select %p35, 0, %s34
      %s37 = sadd.s32 1, %s28
      %s38 = scalar_select %p35, %s37, %s28
      %p39 = scmp.ge.s32.totalorder %s38, 2
      %s40 = scalar_select %p39, 0, %s38
      %s41 = ssub.s32 %s28, %s40
      %p42 = scmp.eq.s32.totalorder %s41, 0
      %s44 = sadd.s32 %s43, 1
      %s45 = scalar_select %p42, %s43, %s44
      %p48 = pneg %p42
      %p49 = scmp.eq.s32.totalorder %s21, 1
      %p50 = por %p48, %p49
      %p51 = scmp.ne.s32.totalorder %s43, %s46
      %p52 = scmp.eq.s32.totalorder %s21, 0
      %p53 = por %p51, %p52
      %p54 = scmp.ne.s32.totalorder %s43, %s46
      %p55 = scmp.eq.s32.totalorder %s26, 1
      %p56 = por %p54, %p55
      %p57 = scmp.ne.s32.totalorder %s46, %s47
      %p58 = scmp.eq.s32.totalorder %s26, 0
      %p59 = por %p57, %p58
      %p60 = scmp.ne.s32.totalorder %s46, %s47
      %p61 = scmp.eq.s32.totalorder %s27, 1
      %p62 = por %p60, %p61
      %p64 = scmp.ne.s32.totalorder %s47, %s63
      %p65 = scmp.eq.s32.totalorder %s27, 0
      %p66 = por %p64, %p65
      %s68 = sadd.s32 %s67, 1
      %p71 = scmp.eq.s32.totalorder %s21, 1
      %p72 = scmp.ne.s32.totalorder %s67, %s69
      %p73 = scmp.eq.s32.totalorder %s21, 0
      %p74 = por %p72, %p73
      %p75 = scmp.ne.s32.totalorder %s67, %s69
      %p76 = scmp.eq.s32.totalorder %s26, 1
      %p77 = por %p75, %p76
      %p78 = scmp.ne.s32.totalorder %s69, %s70
      %p79 = scmp.eq.s32.totalorder %s26, 0
      %p80 = por %p78, %p79
      %p81 = scmp.ne.s32.totalorder %s69, %s70
      %p82 = scmp.eq.s32.totalorder %s27, 1
      %p83 = por %p81, %p82
      %p85 = scmp.ne.s32.totalorder %s70, %s84
      %p86 = scmp.eq.s32.totalorder %s27, 0
      %p87 = por %p85, %p86
      %s89 = sadd.s32 %s88, 1
      %p92 = scmp.eq.s32.totalorder %s21, 1
      %p93 = scmp.ne.s32.totalorder %s88, %s90
      %p94 = scmp.eq.s32.totalorder %s21, 0
      %p95 = por %p93, %p94
      %p96 = scmp.ne.s32.totalorder %s88, %s90
      %p97 = scmp.eq.s32.totalorder %s26, 1
      %p98 = por %p96, %p97
      %p99 = scmp.ne.s32.totalorder %s90, %s91
      %p100 = scmp.eq.s32.totalorder %s26, 0
      %p101 = por %p99, %p100
      %p102 = scmp.ne.s32.totalorder %s90, %s91
      %p103 = scmp.eq.s32.totalorder %s27, 1
      %p104 = por %p102, %p103
      %p106 = scmp.ne.s32.totalorder %s91, %s105
      %p107 = scmp.eq.s32.totalorder %s27, 0
      %p108 = por %p106, %p107
      %s110 = sadd.s32 %s109, 1
      %p113 = scmp.eq.s32.totalorder %s21, 1
      %p114 = scmp.ne.s32.totalorder %s109, %s111
      %p115 = scmp.eq.s32.totalorder %s21, 0
      %p116 = por %p114, %p115
      %p117 = scmp.ne.s32.totalorder %s109, %s111
      %p118 = scmp.eq.s32.totalorder %s26, 1
      %p119 = por %p117, %p118
      %p120 = scmp.ne.s32.totalorder %s111, %s112
      %p121 = scmp.eq.s32.totalorder %s26, 0
      %p122 = por %p120, %p121
      %p123 = scmp.ne.s32.totalorder %s111, %s112
      %p124 = scmp.eq.s32.totalorder %s27, 1
      %p125 = por %p123, %p124
      %p127 = scmp.ne.s32.totalorder %s112, %s126
      %p128 = scmp.eq.s32.totalorder %s27, 0
      %p129 = por %p127, %p128
      %s131 = sadd.s32 %s130, 1
      %p134 = scmp.eq.s32.totalorder %s21, 1
      %p135 = scmp.ne.s32.totalorder %s130, %s132
      %p136 = scmp.eq.s32.totalorder %s21, 0
      %p137 = por %p135, %p136
      %p138 = scmp.ne.s32.totalorder %s130, %s132
      %p139 = scmp.eq.s32.totalorder %s26, 1
      %p140 = por %p138, %p139
      %p141 = scmp.ne.s32.totalorder %s132, %s133
      %p142 = scmp.eq.s32.totalorder %s26, 0
      %p143 = por %p141, %p142
      %p144 = scmp.ne.s32.totalorder %s132, %s133
      %p145 = scmp.eq.s32.totalorder %s27, 1
      %p146 = por %p144, %p145
      %p148 = scmp.ne.s32.totalorder %s133, %s147
      %p149 = scmp.eq.s32.totalorder %s27, 0
      %p150 = por %p148, %p149
      %s152 = sadd.s32 %s151, 1
      %p155 = scmp.eq.s32.totalorder %s21, 1
      %p156 = scmp.ne.s32.totalorder %s151, %s153
      %p157 = scmp.eq.s32.totalorder %s21, 0
      %p158 = por %p156, %p157
      %p159 = scmp.ne.s32.totalorder %s151, %s153
      %p160 = scmp.eq.s32.totalorder %s26, 1
      %p161 = por %p159, %p160
      %p162 = scmp.ne.s32.totalorder %s153, %s154
      %p163 = scmp.eq.s32.totalorder %s26, 0
      %p164 = por %p162, %p163
      %p165 = scmp.ne.s32.totalorder %s153, %s154
      %p166 = scmp.eq.s32.totalorder %s27, 1
      %p167 = por %p165, %p166
      %p169 = scmp.ne.s32.totalorder %s154, %s168
      %p170 = scmp.eq.s32.totalorder %s27, 0
      %p171 = por %p169, %p170
      %s173 = sadd.s32 %s172, 1
      %p176 = scmp.eq.s32.totalorder %s21, 1
      %p177 = scmp.ne.s32.totalorder %s172, %s174
      %p178 = scmp.eq.s32.totalorder %s21, 0
      %p179 = por %p177, %p178
      %p180 = scmp.ne.s32.totalorder %s172, %s174
      %p181 = scmp.eq.s32.totalorder %s26, 1
      %p182 = por %p180, %p181
      %p183 = scmp.ne.s32.totalorder %s174, %s175
      %p184 = scmp.eq.s32.totalorder %s26, 0
      %p185 = por %p183, %p184
      %p186 = scmp.ne.s32.totalorder %s174, %s175
      %p187 = scmp.eq.s32.totalorder %s27, 1
      %p188 = por %p186, %p187
      %p190 = scmp.ne.s32.totalorder %s175, %s189
      %p191 = scmp.eq.s32.totalorder %s27, 0
      %p192 = por %p190, %p191
      %s194 = sadd.s32 %s193, 1
      %p197 = scmp.eq.s32.totalorder %s21, 1
      %p198 = scmp.ne.s32.totalorder %s193, %s195
      %p199 = scmp.eq.s32.totalorder %s21, 0
      %p200 = por %p198, %p199
      %p201 = scmp.ne.s32.totalorder %s193, %s195
      %p202 = scmp.eq.s32.totalorder %s26, 1
      %p203 = por %p201, %p202
      %p204 = scmp.ne.s32.totalorder %s195, %s196
      %p205 = scmp.eq.s32.totalorder %s26, 0
      %p206 = por %p204, %p205
      %p207 = scmp.ne.s32.totalorder %s195, %s196
      %p208 = scmp.eq.s32.totalorder %s27, 1
      %p209 = por %p207, %p208
      %p211 = scmp.ne.s32.totalorder %s196, %s210
      %p212 = scmp.eq.s32.totalorder %s27, 0
      %p213 = por %p211, %p212
      %s215 = sadd.s32 %s214, 1
      %p218 = scmp.eq.s32.totalorder %s21, 1
      %p219 = scmp.ne.s32.totalorder %s214, %s216
      %p220 = scmp.eq.s32.totalorder %s21, 0
      %p221 = por %p219, %p220
      %p222 = scmp.ne.s32.totalorder %s214, %s216
      %p223 = scmp.eq.s32.totalorder %s26, 1
      %p224 = por %p222, %p223
      %p225 = scmp.ne.s32.totalorder %s216, %s217
      %p226 = scmp.eq.s32.totalorder %s26, 0
      %p227 = por %p225, %p226
      %p228 = scmp.ne.s32.totalorder %s216, %s217
      %p229 = scmp.eq.s32.totalorder %s27, 1
      %p230 = por %p228, %p229
      %p232 = scmp.ne.s32.totalorder %s217, %s231
      %p233 = scmp.eq.s32.totalorder %s27, 0
      %p234 = por %p232, %p233
      %s235 = ssub.s32 %s28, %s40
      %s236 = ssub.s32 %s29, %s36
      %s237 = sor.u32 %s235, %s236
      %p238 = scmp.eq.s32.totalorder %s237, 0
      %s240 = sadd.s32 %s239, 1
      %s241 = scalar_select %p238, %s239, %s240
      %p244 = pneg %p238
      %p245 = scmp.eq.s32.totalorder %s21, 1
      %p246 = por %p244, %p245
      %p247 = scmp.ne.s32.totalorder %s239, %s242
      %p248 = scmp.eq.s32.totalorder %s21, 0
      %p249 = por %p247, %p248
      %p250 = scmp.ne.s32.totalorder %s239, %s242
      %p251 = scmp.eq.s32.totalorder %s26, 1
      %p252 = por %p250, %p251
      %p253 = scmp.ne.s32.totalorder %s242, %s243
      %p254 = scmp.eq.s32.totalorder %s26, 0
      %p255 = por %p253, %p254
      %p256 = scmp.ne.s32.totalorder %s242, %s243
      %p257 = scmp.eq.s32.totalorder %s27, 1
      %p258 = por %p256, %p257
      %p260 = scmp.ne.s32.totalorder %s243, %s259
      %p261 = scmp.eq.s32.totalorder %s27, 0
      %p262 = por %p260, %p261
      %p263 = scmp.le.s32.totalorder 1, %s21
      %p264 = scmp.lt.s32.totalorder %s21, 3
      %p265 = pnand %p263, %p264
      %p266 = pneg %p265
      // Predicated region
      $region9: #{tpu_custom_call.1} parent=5 // pred_check
        _
      $region10: #{tpu_custom_call.1} parent=5 // pred_check_branch
        %268 = sbr.rel (%p265) target = $region12
      $region11: #{tpu_custom_call.1} parent=5 // pred_region
        %s269 = ssub.s32 %s21, 1
        // Predicated region
        $region13: #{tpu_custom_call.1} parent=11 // pred_check
          %p270 = pneg %p80
        $region14: #{tpu_custom_call.1} parent=11 // pred_check_branch
          %272 = sbr.rel (%p270) target = $region16
        $region15: #{tpu_custom_call.1} parent=11 // pred_region
          _
        $region16: #{tpu_custom_call.1} parent=11 // pred_fallthru
          _
        // Predicated region
        $region17: #{tpu_custom_call.1} parent=11 // pred_check
          %p273 = pneg %p101
        $region18: #{tpu_custom_call.1} parent=11 // pred_check_branch
          %275 = sbr.rel (%p273) target = $region20
        $region19: #{tpu_custom_call.1} parent=11 // pred_region
          %277 = vsyncadd [#allocation6], 0
          %s279 = sshll.u32 %s2, 4
          %s280 = int_to_ptr.hbm [resolvable:$true] %s279
          %s281 = sshll.u32 [#allocation5], 4
          %s282 = int_to_ptr.vmem [resolvable:$true] %s281
          %284 = dma.hbm_to_vmem [thread:$0]  %s280, 16, %s282, [#allocation6]
        $region20: #{tpu_custom_call.1} parent=11 // pred_fallthru
          _
        // Predicated region
        $region21: #{tpu_custom_call.1} parent=11 // pred_check
          %p285 = pneg %p122
        $region22: #{tpu_custom_call.1} parent=11 // pred_check_branch
          %287 = sbr.rel (%p285) target = $region24
        $region23: #{tpu_custom_call.1} parent=11 // pred_region
          %289 = vsyncadd [#allocation9], 0
          %s291 = sshll.u32 %s3, 4
          %s292 = int_to_ptr.hbm [resolvable:$true] %s291
          %s293 = sshll.u32 [#allocation8], 4
          %s294 = int_to_ptr.vmem [resolvable:$true] %s293
          %296 = dma.hbm_to_vmem [thread:$0]  %s292, 32, %s294, [#allocation9]
        $region24: #{tpu_custom_call.1} parent=11 // pred_fallthru
          _
        // Predicated region
        $region25: #{tpu_custom_call.1} parent=11 // pred_check
          %p297 = pneg %p143
        $region26: #{tpu_custom_call.1} parent=11 // pred_check_branch
          %299 = sbr.rel (%p297) target = $region28
        $region27: #{tpu_custom_call.1} parent=11 // pred_region
          %301 = vsyncadd [#allocation9], 0
          %s303 = sshll.u32 %s4, 4
          %s304 = int_to_ptr.hbm [resolvable:$true] %s303
          %s305 = sshll.u32 [#allocation10], 4
          %s306 = int_to_ptr.vmem [resolvable:$true] %s305
          %308 = dma.hbm_to_vmem [thread:$0]  %s304, 16, %s306, [#allocation9]
        $region28: #{tpu_custom_call.1} parent=11 // pred_fallthru
          _
        // Predicated region
        $region29: #{tpu_custom_call.1} parent=11 // pred_check
          %p309 = pneg %p164
        $region30: #{tpu_custom_call.1} parent=11 // pred_check_branch
          %311 = sbr.rel (%p309) target = $region32
        $region31: #{tpu_custom_call.1} parent=11 // pred_region
          %313 = vsyncadd [#allocation12], 0
          %s315 = sshll.u32 %s5, 4
          %s316 = int_to_ptr.hbm [resolvable:$true] %s315
          %s317 = sshll.u32 [#allocation11], 4
          %s318 = int_to_ptr.vmem [resolvable:$true] %s317
          %320 = dma.hbm_to_vmem [thread:$0]  %s316, 32, %s318, [#allocation12]
        $region32: #{tpu_custom_call.1} parent=11 // pred_fallthru
          _
        // Predicated region
        $region33: #{tpu_custom_call.1} parent=11 // pred_check
          %p321 = pneg %p185
        $region34: #{tpu_custom_call.1} parent=11 // pred_check_branch
          %323 = sbr.rel (%p321) target = $region36
        $region35: #{tpu_custom_call.1} parent=11 // pred_region
          %325 = vsyncadd [#allocation12], 0
          %s327 = sshll.u32 %s6, 4
          %s328 = int_to_ptr.hbm [resolvable:$true] %s327
          %s329 = sshll.u32 [#allocation13], 4
          %s330 = int_to_ptr.vmem [resolvable:$true] %s329
          %332 = dma.hbm_to_vmem [thread:$0]  %s328, 16, %s330, [#allocation12]
        $region36: #{tpu_custom_call.1} parent=11 // pred_fallthru
          _
        // Predicated region
        $region37: #{tpu_custom_call.1} parent=11 // pred_check
          %p333 = pneg %p206
        $region38: #{tpu_custom_call.1} parent=11 // pred_check_branch
          %335 = sbr.rel (%p333) target = $region40
        $region39: #{tpu_custom_call.1} parent=11 // pred_region
          _
        $region40: #{tpu_custom_call.1} parent=11 // pred_fallthru
          _
        // Predicated region
        $region41: #{tpu_custom_call.1} parent=11 // pred_check
          %p336 = pneg %p227
        $region42: #{tpu_custom_call.1} parent=11 // pred_check_branch
          %338 = sbr.rel (%p336) target = $region44
        $region43: #{tpu_custom_call.1} parent=11 // pred_region
          _
        $region44: #{tpu_custom_call.1} parent=11 // pred_fallthru
          _
      $region12: #{tpu_custom_call.1} parent=5 // pred_fallthru
        _
      %p339 = scmp.lt.s32.totalorder %s21, 2
      // Predicated region
      $region45: #{tpu_custom_call.1} parent=5 // pred_check
        %p340 = pneg %p339
      $region46: #{tpu_custom_call.1} parent=5 // pred_check_branch
        %342 = sbr.rel (%p340) target = $region48
      $region47: #{tpu_custom_call.1} parent=5 // pred_region
        // Predicated region
        $region49: #{tpu_custom_call.1} parent=47 // pred_check
          %p343 = pneg %p53
        $region50: #{tpu_custom_call.1} parent=47 // pred_check_branch
          %345 = sbr.rel (%p343) target = $region52
        $region51: #{tpu_custom_call.1} parent=47 // pred_region
          %p346 = scmp.lt.s32.totalorder %s28, 1
          %s347 = scalar_select %p346, %s28, 1
          %s348 = smul.addr %s347, 4
          %s349 = scalar_lea.vmem %s0, %s348
        $region52: #{tpu_custom_call.1} parent=47 // pred_fallthru
          _
      $region48: #{tpu_custom_call.1} parent=5 // pred_fallthru
        _
      %p350 = scmp.le.s32.totalorder 1, %s21
      %p351 = scmp.lt.s32.totalorder %s21, 3
      %p352 = pnand %p350, %p351
      %p353 = pneg %p352
      // Predicated region
      $region53: #{tpu_custom_call.1} parent=5 // pred_check
        _
      $region54: #{tpu_custom_call.1} parent=5 // pred_check_branch
        %355 = sbr.rel (%p352) target = $region56
      $region55: #{tpu_custom_call.1} parent=5 // pred_region
        %s356 = ssub.s32 %s21, 1
        // Predicated region
        $region57: #{tpu_custom_call.1} parent=55 // pred_check
          %p357 = pneg %p101
        $region58: #{tpu_custom_call.1} parent=55 // pred_check_branch
          %359 = sbr.rel (%p357) target = $region60
        $region59: #{tpu_custom_call.1} parent=55 // pred_region
          %361 = dma.done [#allocation6], 16
        $region60: #{tpu_custom_call.1} parent=55 // pred_fallthru
          _
        // Predicated region
        $region61: #{tpu_custom_call.1} parent=55 // pred_check
          %p362 = pneg %p122
        $region62: #{tpu_custom_call.1} parent=55 // pred_check_branch
          %364 = sbr.rel (%p362) target = $region64
        $region63: #{tpu_custom_call.1} parent=55 // pred_region
          %366 = dma.done [#allocation9], 32
        $region64: #{tpu_custom_call.1} parent=55 // pred_fallthru
          _
        // Predicated region
        $region65: #{tpu_custom_call.1} parent=55 // pred_check
          %p367 = pneg %p143
        $region66: #{tpu_custom_call.1} parent=55 // pred_check_branch
          %369 = sbr.rel (%p367) target = $region68
        $region67: #{tpu_custom_call.1} parent=55 // pred_region
          %371 = dma.done [#allocation9], 16
        $region68: #{tpu_custom_call.1} parent=55 // pred_fallthru
          _
        // Predicated region
        $region69: #{tpu_custom_call.1} parent=55 // pred_check
          %p372 = pneg %p164
        $region70: #{tpu_custom_call.1} parent=55 // pred_check_branch
          %374 = sbr.rel (%p372) target = $region72
        $region71: #{tpu_custom_call.1} parent=55 // pred_region
          %376 = dma.done [#allocation12], 32
        $region72: #{tpu_custom_call.1} parent=55 // pred_fallthru
          _
        // Predicated region
        $region73: #{tpu_custom_call.1} parent=55 // pred_check
          %p377 = pneg %p185
        $region74: #{tpu_custom_call.1} parent=55 // pred_check_branch
          %379 = sbr.rel (%p377) target = $region76
        $region75: #{tpu_custom_call.1} parent=55 // pred_region
          %381 = dma.done [#allocation12], 16
        $region76: #{tpu_custom_call.1} parent=55 // pred_fallthru
          _
        %p382 = scmp.lt.s32.totalorder %s30, 1
        %s383 = scalar_select %p382, %s30, 1
        %s384 = smul.addr %s383, 4
        %s385 = scalar_lea.vmem %s0, %s384
        %p386 = pneg %p59
        %p387 = pneg %p56
        %p388 = pneg %p80
        %p389 = pneg %p77
        %p390 = pneg %p101
        %p391 = pneg %p98
        %p392 = pneg %p122
        %p393 = pneg %p119
        %p394 = pneg %p143
        %p395 = pneg %p140
        %p396 = pneg %p164
        %p397 = pneg %p161
        %p398 = pneg %p185
        %p399 = pneg %p182
        %p400 = pneg %p206
        %p401 = pneg %p203
        %p402 = pneg %p227
        %p403 = pneg %p224
        %p404 = pneg %p255
        %p405 = pneg %p252
        %s406 = sand.u32 %s242, 1
        %s407 = scalar_lea.sflag [#allocation7], %s406
        %s408 = sand.u32 %s242, 1
        %s409 = smul.addr %s408, 8
        %s410 = scalar_lea.vmem [#allocation14], %s409
        %p411 = scmp.lt.s32.totalorder %s30, 1
        %s412 = scalar_select %p411, %s30, 1
        %s413 = smul.addr %s412, 4
        %s414 = scalar_lea.vmem %s0, %s413
        %p416 = scmp.eq.s32.totalorder %s31, 0
        // Predicated region
        $region77: #{tpu_custom_call.1} parent=55 // pred_check
          %p417 = pneg %p416
        $region78: #{tpu_custom_call.1} parent=55 // pred_check_branch
          %419 = sbr.rel (%p417) target = $region80
        $region79: #{tpu_custom_call.1} parent=55 // pred_region
          %v420 = vld [vmem:[%s414] sm:$0xf]
          %v421 = vld [vmem:[#allocation8] sm:$0x3]
          %v422 = vld [vmem:[#allocation10] sm:$0x1]
          %v424 = vperm.slane %v422, 0
          %vm426 = vcmask 31744
          %v428 = vsel %vm426, %v420, 0
          %vm430 = vcmask 1041408
          %v432 = vsel %vm430, %v421, 0
          %434 = vmatpush.bf16.msra.mxu0 0
          %435 = vmatpush.bf16.msra.mxu0 0
          %436 = vmatpush.bf16.msra.mxu0 0
          %437 = vmatpush.bf16.msra.mxu0 0
          %438 = vmatpush.bf16.msra.mxu0 0
          %439 = vmatpush.bf16.msra.mxu0 0
          %440 = vmatpush.bf16.msra.mxu0 0
          %441 = vmatpush.bf16.msra.mxu0 %v432
          %442 = vmatmul.bf16.gmra.mxu0 %v428
          %v443 = vpop.f32.mrf.mxu0
          %v444 = vadd.f32 %v424, %v443
          %v445 = vpop.f32.mrf.mxu0
          %446 = vdwg.mxu0
          %v447 = vld [vmem:[#allocation11] sm:$0x3]
          %v448 = vld [vmem:[#allocation13] sm:$0x1]
          %v450 = vperm.slane %v448, 0
          %v453 = vsel %vm430, %v447, 0
          %455 = vmatpush.bf16.msra.mxu0 0
          %456 = vmatpush.bf16.msra.mxu0 0
          %457 = vmatpush.bf16.msra.mxu0 0
          %458 = vmatpush.bf16.msra.mxu0 0
          %459 = vmatpush.bf16.msra.mxu0 0
          %460 = vmatpush.bf16.msra.mxu0 0
          %461 = vmatpush.bf16.msra.mxu0 0
          %462 = vmatpush.bf16.msra.mxu0 %v453
          %463 = vmatmul.bf16.gmra.mxu0 %v428
          %v464 = vpop.f32.mrf.mxu0
          %v465 = vadd.f32 %v450, %v464
          %v466 = vpop.f32.mrf.mxu0
          %467 = vdwg.mxu0
          %v468 = vpack.c.bf16 %v444, %v444
          %v469 = vpack.c.bf16 %v465, %v465
          %vm470 = vcmask 60416
          %471 = vst.msk [vmem:[#allocation2] sm:$0xf] %vm470, %v468
          %472 = vst.msk [vmem:[#allocation3] sm:$0xf] %vm470, %v469
          %474 = vrot.lane.b32.xlu0 %v468, 120
          %v475 = vpop.permute.xlu0 %474
          %s477 = scalar_lea.vmem [#allocation2], 4
          %478 = vst.msk [vmem:[%s477] sm:$0xf] %vm470, %v475
          %480 = vrot.lane.b32.xlu0 %v469, 120
          %v481 = vpop.permute.xlu0 %480
          %s483 = scalar_lea.vmem [#allocation3], 4
          %484 = vst.msk [vmem:[%s483] sm:$0xf] %vm470, %v481
          %485 = vrot.lane.b32.xlu0 %v468, 112
          %v486 = vpop.permute.xlu0 %485
          %s488 = scalar_lea.vmem [#allocation2], 8
          %489 = vst.msk [vmem:[%s488] sm:$0xf] %vm470, %v486
          %490 = vrot.lane.b32.xlu0 %v469, 112
          %v491 = vpop.permute.xlu0 %490
          %s493 = scalar_lea.vmem [#allocation3], 8
          %494 = vst.msk [vmem:[%s493] sm:$0xf] %vm470, %v491
          %495 = vrot.lane.b32.xlu0 %v468, 104
          %v496 = vpop.permute.xlu0 %495
          %s498 = scalar_lea.vmem [#allocation2], 12
          %499 = vst.msk [vmem:[%s498] sm:$0xf] %vm470, %v496
          %500 = vrot.lane.b32.xlu0 %v469, 104
          %v501 = vpop.permute.xlu0 %500
          %s503 = scalar_lea.vmem [#allocation3], 12
          %504 = vst.msk [vmem:[%s503] sm:$0xf] %vm470, %v501
        $region80: #{tpu_custom_call.1} parent=55 // pred_fallthru
          _
        %s505 = smul.u32 %s31, 8
        %s506 = sshra.s32 %s505, 3
        %s507 = sand.u32 %s505, 7
        %s508 = smul.addr %s506, 4
        %s509 = scalar_lea.vmem %s414, %s508
        %v510 = vld [vmem:[%s509] sm:$0xf]
        %v511 = vld [vmem:[%s1] sm:$0x3]
        %v512 = vld [vmem:[#allocation5] sm:$0x1]
        %v514 = vperm.slane %v512, 0
        %vm516 = vcmask 31744
        %v518 = vsel %vm516, %v510, 0
        %vm520 = vcmask 1041408
        %v522 = vsel %vm520, %v511, 0
        %524 = vmatpush.bf16.msra.mxu0 0
        %525 = vmatpush.bf16.msra.mxu0 0
        %526 = vmatpush.bf16.msra.mxu0 0
        %527 = vmatpush.bf16.msra.mxu0 0
        %528 = vmatpush.bf16.msra.mxu0 0
        %529 = vmatpush.bf16.msra.mxu0 0
        %530 = vmatpush.bf16.msra.mxu0 0
        %531 = vmatpush.bf16.msra.mxu0 %v522
        %532 = vmatmul.bf16.gmra.mxu0 %v518
        %v533 = vpop.f32.mrf.mxu0
        %v534 = vadd.f32 %v514, %v533
        %v535 = vpop.f32.mrf.mxu0
        %536 = vdwg.mxu0
        %v537 = vpack.c.bf16 %v534, %v534
        %v538 = vld [vmem:[#allocation2] sm:$0xf]
        %vm539 = vcmask 64512
        %v541 = vsel %vm539, %v537, 0
        %v544 = vsel %vm539, %v538, 0
        %546 = vmatpush.bf16.xpose.msra.mxu0 0
        %547 = vmatpush.bf16.xpose.msra.mxu0 0
        %548 = vmatpush.bf16.xpose.msra.mxu0 0
        %549 = vmatpush.bf16.xpose.msra.mxu0 0
        %550 = vmatpush.bf16.xpose.msra.mxu0 0
        %551 = vmatpush.bf16.xpose.msra.mxu0 0
        %552 = vmatpush.bf16.xpose.msra.mxu0 0
        %553 = vmatpush.bf16.xpose.msra.mxu0 %v544
        %554 = vmatmul.bf16.gmra.mxu0 %v541
        %v555 = vpop.f32.mrf.mxu0
        %v556 = vadd.f32 0.0, %v555
        %v557 = vpop.f32.mrf.mxu0
        %558 = vdwg.mxu0
        %v559 = vsel %vm539, %v556, -inf
        %560 = vmax.xlane.f32.xlu0 %v559
        %v561 = vpop.xlane.xlu0 %560
        %v562 = vsub.f32 %v556, %v561
        %v563 = vmul.f32 %v562, 1.442695
        %v564 = vpow.pop %v563
        %v565 = vsel %vm539, %v564, 0.0
        %566 = vadd.xlane.f32.xlu0 %v565
        %v567 = vpop.xlane.xlu0 %566
        %v568 = vpack.c.bf16 %v564, %v564
        %v569 = vld [vmem:[#allocation3] sm:$0xf]
        %v571 = vsel %vm539, %v568, 0
        %vm573 = vcmask 1043456
        %v575 = vsel %vm573, %v569, 0
        %577 = vmatpush.bf16.msra.mxu0 0
        %578 = vmatpush.bf16.msra.mxu0 0
        %579 = vmatpush.bf16.msra.mxu0 0
        %580 = vmatpush.bf16.msra.mxu0 0
        %581 = vmatpush.bf16.msra.mxu0 0
        %582 = vmatpush.bf16.msra.mxu0 0
        %583 = vmatpush.bf16.msra.mxu0 0
        %584 = vmatpush.bf16.msra.mxu0 %v575
        %585 = vmatmul.bf16.gmra.mxu0 %v571
        %v586 = vpop.f32.mrf.mxu0
        %v587 = vadd.f32 0.0, %v586
        %v588 = vpop.f32.mrf.mxu0
        %589 = vdwg.mxu0
        %v590 = vrcp.pop %v567
        %v591 = vmul.f32 %v587, %v590
        %v592 = vadd.f32 %v534, %v591
        %593 = vst.msk [vmem:[#allocation4] sm:$0xff] %vm539, %v592
        %s594 = scalar_lea.vmem [#allocation2], 4
        %v595 = vld [vmem:[%s594] sm:$0xf]
        %v597 = vunpack.c.l.b16 %v537
        %v598 = vpack.c.b16 %v597, %v597
        %599 = vrot.lane.b32.xlu0 %v598, 120
        %v600 = vpop.permute.xlu0 %599
        %v602 = vsel %vm539, %v600, 0
        %v605 = vsel %vm539, %v595, 0
        %607 = vmatpush.bf16.xpose.msra.mxu0 0
        %608 = vmatpush.bf16.xpose.msra.mxu0 0
        %609 = vmatpush.bf16.xpose.msra.mxu0 0
        %610 = vmatpush.bf16.xpose.msra.mxu0 0
        %611 = vmatpush.bf16.xpose.msra.mxu0 0
        %612 = vmatpush.bf16.xpose.msra.mxu0 0
        %613 = vmatpush.bf16.xpose.msra.mxu0 0
        %614 = vmatpush.bf16.xpose.msra.mxu0 %v605
        %615 = vmatmul.bf16.gmra.mxu0 %v602
        %v616 = vpop.f32.mrf.mxu0
        %v617 = vadd.f32 0.0, %v616
        %v618 = vpop.f32.mrf.mxu0
        %619 = vdwg.mxu0
        %v620 = vsel %vm539, %v617, -inf
        %621 = vmax.xlane.f32.xlu0 %v620
        %v622 = vpop.xlane.xlu0 %621
        %v623 = vsub.f32 %v617, %v622
        %v624 = vmul.f32 %v623, 1.442695
        %v625 = vpow.pop %v624
        %v626 = vsel %vm539, %v625, 0.0
        %627 = vadd.xlane.f32.xlu0 %v626
        %v628 = vpop.xlane.xlu0 %627
        %v629 = vpack.c.bf16 %v625, %v625
        %s630 = scalar_lea.vmem [#allocation3], 4
        %v631 = vld [vmem:[%s630] sm:$0xf]
        %v633 = vsel %vm539, %v629, 0
        %v636 = vsel %vm573, %v631, 0
        %638 = vmatpush.bf16.msra.mxu0 0
        %639 = vmatpush.bf16.msra.mxu0 0
        %640 = vmatpush.bf16.msra.mxu0 0
        %641 = vmatpush.bf16.msra.mxu0 0
        %642 = vmatpush.bf16.msra.mxu0 0
        %643 = vmatpush.bf16.msra.mxu0 0
        %644 = vmatpush.bf16.msra.mxu0 0
        %645 = vmatpush.bf16.msra.mxu0 %v636
        %646 = vmatmul.bf16.gmra.mxu0 %v633
        %v647 = vpop.f32.mrf.mxu0
        %v648 = vadd.f32 0.0, %v647
        %v649 = vpop.f32.mrf.mxu0
        %650 = vdwg.mxu0
        %v651 = vrcp.pop %v628
        %v652 = vmul.f32 %v648, %v651
        %654 = vrot.lane.b32.xlu0 %v652, 8
        %v655 = vpop.permute.xlu0 %654
        %v657 = vadd.f32 %v534, %v655
        %vm658 = vcmask 130112
        %659 = vst.msk [vmem:[#allocation4] sm:$0xff] %vm658, %v657
        %s660 = scalar_lea.vmem [#allocation2], 8
        %v661 = vld [vmem:[%s660] sm:$0xf]
        %662 = vrot.lane.b32.xlu0 %v598, 112
        %v663 = vpop.permute.xlu0 %662
        %v665 = vsel %vm539, %v663, 0
        %v668 = vsel %vm539, %v661, 0
        %670 = vmatpush.bf16.xpose.msra.mxu0 0
        %671 = vmatpush.bf16.xpose.msra.mxu0 0
        %672 = vmatpush.bf16.xpose.msra.mxu0 0
        %673 = vmatpush.bf16.xpose.msra.mxu0 0
        %674 = vmatpush.bf16.xpose.msra.mxu0 0
        %675 = vmatpush.bf16.xpose.msra.mxu0 0
        %676 = vmatpush.bf16.xpose.msra.mxu0 0
        %677 = vmatpush.bf16.xpose.msra.mxu0 %v668
        %678 = vmatmul.bf16.gmra.mxu0 %v665
        %v679 = vpop.f32.mrf.mxu0
        %v680 = vadd.f32 0.0, %v679
        %v681 = vpop.f32.mrf.mxu0
        %682 = vdwg.mxu0
        %v683 = vsel %vm539, %v680, -inf
        %684 = vmax.xlane.f32.xlu0 %v683
        %v685 = vpop.xlane.xlu0 %684
        %v686 = vsub.f32 %v680, %v685
        %v687 = vmul.f32 %v686, 1.442695
        %v688 = vpow.pop %v687
        %v689 = vsel %vm539, %v688, 0.0
        %690 = vadd.xlane.f32.xlu0 %v689
        %v691 = vpop.xlane.xlu0 %690
        %v692 = vpack.c.bf16 %v688, %v688
        %s693 = scalar_lea.vmem [#allocation3], 8
        %v694 = vld [vmem:[%s693] sm:$0xf]
        %v696 = vsel %vm539, %v692, 0
        %v699 = vsel %vm573, %v694, 0
        %701 = vmatpush.bf16.msra.mxu0 0
        %702 = vmatpush.bf16.msra.mxu0 0
        %703 = vmatpush.bf16.msra.mxu0 0
        %704 = vmatpush.bf16.msra.mxu0 0
        %705 = vmatpush.bf16.msra.mxu0 0
        %706 = vmatpush.bf16.msra.mxu0 0
        %707 = vmatpush.bf16.msra.mxu0 0
        %708 = vmatpush.bf16.msra.mxu0 %v699
        %709 = vmatmul.bf16.gmra.mxu0 %v696
        %v710 = vpop.f32.mrf.mxu0
        %v711 = vadd.f32 0.0, %v710
        %v712 = vpop.f32.mrf.mxu0
        %713 = vdwg.mxu0
        %v714 = vrcp.pop %v691
        %v715 = vmul.f32 %v711, %v714
        %717 = vrot.lane.b32.xlu0 %v715, 16
        %v718 = vpop.permute.xlu0 %717
        %v720 = vadd.f32 %v534, %v718
        %vm721 = vcmask 195712
        %722 = vst.msk [vmem:[#allocation4] sm:$0xff] %vm721, %v720
        %s723 = scalar_lea.vmem [#allocation2], 12
        %v724 = vld [vmem:[%s723] sm:$0xf]
        %725 = vrot.lane.b32.xlu0 %v598, 104
        %v726 = vpop.permute.xlu0 %725
        %v728 = vsel %vm539, %v726, 0
        %v731 = vsel %vm539, %v724, 0
        %733 = vmatpush.bf16.xpose.msra.mxu0 0
        %734 = vmatpush.bf16.xpose.msra.mxu0 0
        %735 = vmatpush.bf16.xpose.msra.mxu0 0
        %736 = vmatpush.bf16.xpose.msra.mxu0 0
        %737 = vmatpush.bf16.xpose.msra.mxu0 0
        %738 = vmatpush.bf16.xpose.msra.mxu0 0
        %739 = vmatpush.bf16.xpose.msra.mxu0 0
        %740 = vmatpush.bf16.xpose.msra.mxu0 %v731
        %741 = vmatmul.bf16.gmra.mxu0 %v728
        %v742 = vpop.f32.mrf.mxu0
        %v743 = vadd.f32 0.0, %v742
        %v744 = vpop.f32.mrf.mxu0
        %745 = vdwg.mxu0
        %v746 = vsel %vm539, %v743, -inf
        %747 = vmax.xlane.f32.xlu0 %v746
        %v748 = vpop.xlane.xlu0 %747
        %v749 = vsub.f32 %v743, %v748
        %v750 = vmul.f32 %v749, 1.442695
        %v751 = vpow.pop %v750
        %v752 = vsel %vm539, %v751, 0.0
        %753 = vadd.xlane.f32.xlu0 %v752
        %v754 = vpop.xlane.xlu0 %753
        %v755 = vpack.c.bf16 %v751, %v751
        %s756 = scalar_lea.vmem [#allocation3], 12
        %v757 = vld [vmem:[%s756] sm:$0xf]
        %v759 = vsel %vm539, %v755, 0
        %v762 = vsel %vm573, %v757, 0
        %764 = vmatpush.bf16.msra.mxu0 0
        %765 = vmatpush.bf16.msra.mxu0 0
        %766 = vmatpush.bf16.msra.mxu0 0
        %767 = vmatpush.bf16.msra.mxu0 0
        %768 = vmatpush.bf16.msra.mxu0 0
        %769 = vmatpush.bf16.msra.mxu0 0
        %770 = vmatpush.bf16.msra.mxu0 0
        %771 = vmatpush.bf16.msra.mxu0 %v762
        %772 = vmatmul.bf16.gmra.mxu0 %v759
        %v773 = vpop.f32.mrf.mxu0
        %v774 = vadd.f32 0.0, %v773
        %v775 = vpop.f32.mrf.mxu0
        %776 = vdwg.mxu0
        %v777 = vrcp.pop %v754
        %v778 = vmul.f32 %v774, %v777
        %780 = vrot.lane.b32.xlu0 %v778, 24
        %v781 = vpop.permute.xlu0 %780
        %v783 = vadd.f32 %v534, %v781
        %vm784 = vcmask 261312
        %785 = vst.msk [vmem:[#allocation4] sm:$0xff] %vm784, %v783
        %v786 = vld [vmem:[#allocation4] sm:$0xff]
        %v787 = vpack.c.bf16 %v786, %v786
        %v788 = vld [vmem:[%s7] sm:$0xf]
        %v789 = vld [vmem:[%s7 + $0x4] sm:$0xf]
        %v790 = vld [vmem:[%s7 + $0x8] sm:$0xf]
        %v791 = vld [vmem:[%s7 + $0xc] sm:$0xf]
        %v792 = vld [vmem:[%s8] sm:$0x1]
        %v794 = vperm.slane %v792, 0
        %v800 = vunpack.c.l.b16 %v788
        %v801 = vunpack.c.l.b16 %v789
        %v802 = vunpack.c.l.b16 %v790
        %v803 = vunpack.c.l.b16 %v791
        %v804 = vpack.c.b16 %v801, %v800
        %v805 = vpack.c.b16 %v803, %v802
        %vm808 = vcmask 261120
        %v810 = vsel %vm808, %v787, 0
        %812 = vmatpush.bf16.msra.mxu0 0
        %813 = vmatpush.bf16.msra.mxu0 0
        %814 = vmatpush.bf16.msra.mxu0 0
        %815 = vmatpush.bf16.msra.mxu0 0
        %816 = vmatpush.bf16.msra.mxu0 0
        %817 = vmatpush.bf16.msra.mxu0 0
        %818 = vmatpush.bf16.msra.mxu0 %v805
        %819 = vmatpush.bf16.msra.mxu0 %v804
        %820 = vmatmul.bf16.gmra.mxu0 %v810
        %v821 = vpop.f32.mrf.mxu0
        %v822 = vadd.f32 %v794, %v821
        %v823 = vpop.f32.mrf.mxu0
        %824 = vdwg.mxu0
        %v825 = vmax.f32 %v822, 0.0
        %v826 = vadd.f32 %v786, %v825
        %827 = vst.msk [vmem:[%s410] sm:$0xff] %vm808, %v826
        %s828 = sand.u32 %s242, 1
        %s829 = scalar_lea.sflag [#allocation7], %s828
        %s830 = sand.u32 %s242, 1
        %s831 = smul.addr %s830, 8
        %s832 = scalar_lea.vmem [#allocation14], %s831
        // Predicated region
        $region81: #{tpu_custom_call.1} parent=55 // pred_check
          %p833 = pneg %p252
        $region82: #{tpu_custom_call.1} parent=55 // pred_check_branch
          %835 = sbr.rel (%p833) target = $region84
        $region83: #{tpu_custom_call.1} parent=55 // pred_region
          %837 = vsyncadd %s829, 0
          %s838 = sadd.s32 %s31, %s30
          %s839 = smul.addr %s838, 8
          %s840 = scalar_lea.hbm %s9, %s839
          %s842 = sshll.u32 %s832, 4
          %s843 = int_to_ptr.vmem [resolvable:$true] %s842
          %s844 = sshll.u32 %s840, 4
          %s845 = int_to_ptr.hbm [resolvable:$true] %s844
          %847 = dma.vmem_to_hbm [thread:$0]  %s843, 128, %s845, %s829
        $region84: #{tpu_custom_call.1} parent=55 // pred_fallthru
          _
      $region56: #{tpu_custom_call.1} parent=5 // pred_fallthru
        _
      %p848 = scmp.le.s32.totalorder 2, %s21
      // Predicated region
      $region85: #{tpu_custom_call.1} parent=5 // pred_check
        %p849 = pneg %p848
      $region86: #{tpu_custom_call.1} parent=5 // pred_check_branch
        %851 = sbr.rel (%p849) target = $region88
      $region87: #{tpu_custom_call.1} parent=5 // pred_region
        %s852 = ssub.s32 %s21, 2
        // Predicated region
        $region89: #{tpu_custom_call.1} parent=87 // pred_check
          %p853 = pneg %p258
        $region90: #{tpu_custom_call.1} parent=87 // pred_check_branch
          %855 = sbr.rel (%p853) target = $region92
        $region91: #{tpu_custom_call.1} parent=87 // pred_region
          %s856 = sand.u32 %s243, 1
          %s857 = scalar_lea.sflag [#allocation7], %s856
          %s858 = sand.u32 %s243, 1
          %s859 = smul.addr %s858, 8
          %s860 = scalar_lea.vmem [#allocation14], %s859
          %862 = dma.done %s857, 128
        $region92: #{tpu_custom_call.1} parent=87 // pred_fallthru
          _
      $region88: #{tpu_custom_call.1} parent=5 // pred_fallthru
        _
    $region6: #{tpu_custom_call.1} parent=1 // loop_footer
      %s25 = sadd.s32 1, %s21
    $region7: #{tpu_custom_call.1} parent=1 // loop_footer_branch
      %20 = sbr.rel target = $region3
    $region8: #{tpu_custom_call.1} parent=1 // loop_exit
      _
    %863 = vsyncpa [#allocation6], 1
    %s864 = scalar_lea.sflag [#allocation6], 1
    %865 = vsyncpa %s864, 1
    %866 = vsyncpa [#allocation9], 1
    %867 = vsyncpa [#allocation12], 1
    %868 = vsyncpa [#allocation7], 1
    %s869 = scalar_lea.sflag [#allocation7], 1
    %870 = vsyncpa %s869, 1

</llo_original>
